<compile_context>
chip_gen: v7x
topology: tpu7x:2x2x1
jax: 0.10.0
libtpu: 0.0.40
codegen_flags: <defaults>
</compile_context>

<pallas_src>
import functools

import jax
import jax.numpy as jnp
from jax import lax
from jax.experimental import pallas as pl
from jax.experimental.pallas import tpu as pltpu


def _round_up(x, m):
    return ((x + m - 1) // m) * m


def _rce_conv_kernel(x_ref, w_ref, b_ref, o_ref, *, K, NB, C_in, stride, dilation, L_tile):
    # x_ref: (1, NB, stride*C_in, win_cols)  phase-decimated zero-padded window (compute dtype);
    #        x_ref[0, b, p*C_in + c, j] == x_padded[b, c, tile_base + j*stride + p]
    # w_ref: (C_out, K*C_in)  im2col weight slab, tap-major rows (row = k*C_in + i)
    # b_ref: (C_out, 1)       f32 bias column
    # o_ref: (NB, C_out, L_tile)
    #
    # Hoisted ReLU: once per window.
    # TODO(synk): on v5e (no bf16 VPU) consider upcasting the window to f32 for the ReLU and
    #             casting taps back right before the dot if the bundle shows VALU saturating.
    xs = [jnp.maximum(x_ref[0, b], 0) for b in range(NB)]

    def tap(b, k):
        r = (k * dilation) % stride
        q = (k * dilation) // stride
        return xs[b][r * C_in:(r + 1) * C_in, q:q + L_tile]   # unit-stride static slice

    # Stacked activation (K*C_in, NB*L_tile): lane-concat batches (128-aligned, cheap),
    # then a single sublane-concat over taps.
    taps = []
    for k in range(K):
        cols = [tap(b, k) for b in range(NB)]
        taps.append(cols[0] if NB == 1 else jnp.concatenate(cols, axis=-1))
    stacked = taps[0] if K == 1 else jnp.concatenate(taps, axis=0)

    # One fused MXU matmul for all taps, f32 accumulation; bias added in the epilogue.
    out = jnp.dot(w_ref[...], stacked, preferred_element_type=jnp.float32)
    out = out + b_ref[...]
    for b in range(NB):
        o_ref[b] = out[:, b * L_tile:(b + 1) * L_tile].astype(o_ref.dtype)


def rce_convolutional_block(x, my_weights, bias, *, stride=1, dilation=1,
                            mxu_dtype=jnp.bfloat16, out_dtype=None,
                            batch_block=None, l_tile=None):
    """ReLU -> conv1d with RC-complementary kernel stack (forward of RCe_ConvolutionalBlock).

    x:          (N, C_in, L)
    my_weights: (C_out//2, C_in, K)
    bias:       (C_out//2,)
    mxu_dtype:  MXU operand dtype (default bf16; accumulation/bias/output stay f32).
                Pass jnp.float32 (or None -> x.dtype) for a full-precision escape hatch.
    out_dtype:  output dtype (default x.dtype); jnp.bfloat16 halves the HBM writeback.
    """
    N, C_in, L = x.shape
    C_half, C_in_w, K = my_weights.shape
    assert C_in_w == C_in
    assert stride >= 1 and dilation >= 1
    C_out = 2 * C_half
    pad = K // 2
    s, d = stride, dilation

    # --- RC-complementary weight stack (matches torch: flip dims [1,2], then flip(0)) ---
    w_full = jnp.concatenate([my_weights, my_weights[::-1, ::-1, ::-1]], axis=0)  # (C_out,C_in,K)
    b_full = jnp.concatenate([bias, bias[::-1]], axis=0)                          # (C_out,)
    # im2col weight slab, tap-major rows: w2d[o, k*C_in + i] = w_full[o, i, k]
    w2d = jnp.transpose(w_full, (0, 2, 1)).reshape(C_out, K * C_in)
    b_col = b_full.reshape(C_out, 1).astype(jnp.float32)

    L_out = (L + 2 * pad - d * (K - 1) - 1) // s + 1
    assert L_out >= 1, "empty output"

    compute_dtype = jnp.dtype(x.dtype) if mxu_dtype is None else jnp.dtype(mxu_dtype)
    out_dtype = jnp.dtype(x.dtype) if out_dtype is None else jnp.dtype(out_dtype)
    cbpe = compute_dtype.itemsize
    obpe = out_dtype.itemsize

    # --- per-generation VMEM budget ---
    try:
        vmem_cap = int(pltpu.get_tpu_info().vmem_capacity_bytes)
    except Exception:
        vmem_cap = 64 << 20                        # conservative (v7x)
    budget = min(int(0.80 * vmem_cap), 100 << 20)   # ~51 MiB on v7x, ~100 MiB on v5e/v6e

    def largest_divisor_le(n, cap):
        for v in range(min(n, max(cap, 1)), 0, -1):
            if n % v == 0:
                return v
        return 1

    # --- tile sizes ---
    if l_tile is None:
        # 512 is near the HBM-roofline knee; 1024 still gains a little on 128-MiB-VMEM chips.
        cap_lt = 1024 if vmem_cap >= (128 << 20) else 512
        l_tile = min(cap_lt, _round_up(L_out, 128))
    assert l_tile % 128 == 0

    if batch_block is None:
        NB = largest_divisor_le(N, 8)              # divides N -> no batch padding / batch slice
    else:
        NB = max(1, int(batch_block))

    def vmem_bytes(nb, lt):
        wc = _round_up(lt + ((K - 1) * d) // s, 128)        # VMEM lane padding
        in_blk = nb * s * C_in * wc * cbpe                   # input window block
        out_blk = nb * C_out * lt * obpe                     # output block
        consts = C_out * _round_up(K * C_in, 128) * cbpe + C_out * 128 * 4
        live = (nb * s * C_in * wc * cbpe                    # ReLU'd windows
                + K * C_in * nb * lt * cbpe                  # stacked activation slab
                + C_out * nb * lt * 4)                       # live f32 matmul result
        return 2 * in_blk + 2 * out_blk + 2 * consts + live

    while int(vmem_bytes(NB, l_tile) * 1.25) > budget and (NB > 1 or l_tile > 128):
        if NB > 1:
            NB = largest_divisor_le(N, NB // 2) if batch_block is None else max(1, NB // 2)
        else:
            l_tile = max(128, l_tile // 2)

    num_l = pl.cdiv(L_out, l_tile)
    num_n = pl.cdiv(N, NB)
    # v7x has two TensorCores: keep a shardable parallel axis when possible.
    if batch_block is None and num_n * num_l < 2 and N > 1:
        NB = largest_divisor_le(N, max(1, NB // 2))
        num_n = pl.cdiv(N, NB)
    N_pad = num_n * NB
    L_out_pad = num_l * l_tile

    # --- stage input as phase-decimated, halo'd L-windows (single pad+cast+window pass) ---
    win_cols = l_tile + ((K - 1) * d) // s
    win_len = win_cols * s
    L_total = max((num_l - 1) * l_tile * s + win_len, L + pad)
    x_pad = jnp.pad(x.astype(compute_dtype),
                    ((0, N_pad - N), (0, 0), (pad, L_total - L - pad)))

    def window(start):
        sl = lax.dynamic_slice_in_dim(x_pad, start, win_len, axis=2)   # (N_pad, C_in, win_len)
        sl = sl.reshape(N_pad, C_in, win_cols, s)
        return jnp.transpose(sl, (0, 3, 1, 2)).reshape(N_pad, s * C_in, win_cols)

    x_win = jax.vmap(window)(jnp.arange(num_l) * (l_tile * s))  # (num_l, N_pad, s*C_in, win_cols)
    w2d = w2d.astype(compute_dtype)

    kernel = functools.partial(_rce_conv_kernel, K=K, NB=NB, C_in=C_in,
                               stride=s, dilation=d, L_tile=l_tile)

    est = int(vmem_bytes(NB, l_tile) * 1.25)
    cp = dict(dimension_semantics=("parallel", "parallel"),
              vmem_limit_bytes=int(min(max(est, 32 << 20), budget)))

    def make_call(single_buffer_consts):
        const_kw = dict(pipeline_mode=pl.Buffered(1)) if single_buffer_consts else {}
        return pl.pallas_call(
            kernel,
            out_shape=jax.ShapeDtypeStruct((N_pad, C_out, L_out_pad), out_dtype),
            grid_spec=pltpu.PrefetchScalarGridSpec(
                num_scalar_prefetch=0,
                grid=(num_n, num_l),
                in_specs=[
                    pl.BlockSpec((1, NB, s * C_in, win_cols), lambda n, l: (l, n, 0, 0)),
                    pl.BlockSpec((C_out, K * C_in), lambda n, l: (0, 0), **const_kw),
                    pl.BlockSpec((C_out, 1), lambda n, l: (0, 0), **const_kw),
                ],
                out_specs=pl.BlockSpec((NB, C_out, l_tile), lambda n, l: (n, 0, l)),
            ),
            compiler_params=pltpu.CompilerParams(**cp),
        )

    try:
        out = make_call(True)(x_win, w2d, b_col)
    except Exception:
        # pipeline_mode=pl.Buffered(1) not supported on this jax version -> default buffering.
        out = make_call(False)(x_win, w2d, b_col)

    if N_pad != N or L_out_pad != L_out:
        out = out[:N, :, :L_out]   # default path pads only L, so this is a trailing-axis slice
    return out


if __name__ == "__main__":
    # Small shapes consistent with the module: conv1d input is (N, C_in, L).
    N, C_in, C_out, K, L = 2, 4, 8, 3, 16

    key = jax.random.PRNGKey(0)
    kx, kw, kb = jax.random.split(key, 3)

    x = jax.random.normal(kx, (N, C_in, L), dtype=jnp.float32)

    # kaiming_uniform_(a=sqrt(5)) on (C_out//2, C_in, K): bound = 1/sqrt(fan_in), fan_in = C_in*K
    fan_in = C_in * K
    bound = 1.0 / (fan_in ** 0.5)
    my_weights = jax.random.uniform(
        kw, (C_out // 2, C_in, K), minval=-bound, maxval=bound, dtype=jnp.float32)
    # The module inits bias to zeros; use a small nonzero bias to exercise the RC bias tying.
    bias = 0.1 * jax.random.normal(kb, (C_out // 2,), dtype=jnp.float32)

    def reference(x, w, b, stride, dilation):
        w_full = jnp.concatenate([w, w[::-1, ::-1, ::-1]], axis=0)
        b_full = jnp.concatenate([b, b[::-1]], axis=0)
        y = lax.conv_general_dilated(
            jnp.maximum(x, 0.0), w_full, window_strides=(stride,),
            padding=[(K // 2, K // 2)], rhs_dilation=(dilation,),
            dimension_numbers=("NCH", "OIH", "NCH"))
        return y + b_full[None, :, None]

    # f32 MXU escape hatch: tight tolerance across stride/dilation variants.
    for stride, dilation in [(1, 1), (1, 2), (2, 1), (2, 2)]:
        out = jax.block_until_ready(
            rce_convolutional_block(x, my_weights, bias, stride=stride, dilation=dilation,
                                    mxu_dtype=jnp.float32))
        ref = reference(x, my_weights, bias, stride, dilation)
        assert out.shape == ref.shape, (out.shape, ref.shape)
        err = float(jnp.max(jnp.abs(out - ref)))
        assert jnp.allclose(out, ref, atol=2e-5, rtol=2e-5), (stride, dilation, err)

    # Default path: bf16 MXU operands (f32 accumulation) -> loose tolerance vs f32 reference.
    for stride, dilation in [(1, 1), (2, 2)]:
        out = jax.block_until_ready(
            rce_convolutional_block(x, my_weights, bias, stride=stride, dilation=dilation))
        ref = reference(x, my_weights, bias, stride, dilation)
        assert out.shape == ref.shape
        assert jnp.allclose(out, ref, atol=5e-2, rtol=5e-2), (stride, dilation)

    # Optional bf16 output writeback.
    out_bf16 = jax.block_until_ready(
        rce_convolutional_block(x, my_weights, bias, out_dtype=jnp.bfloat16))
    ref = reference(x, my_weights, bias, 1, 1)
    assert out_bf16.dtype == jnp.bfloat16 and out_bf16.shape == ref.shape
    assert jnp.allclose(out_bf16.astype(jnp.float32), ref, atol=5e-2, rtol=5e-2)

    print("KERNEL_OK")
</pallas_src>

<mosaic_0001>
module attributes {stable_mosaic.version = 11 : i64} {
  func.func @_rce_conv_kernel(%arg0: i32, %arg1: i32, %arg2: memref<1x1x4x130xf32, #tpu.memory_space<vmem>>, %arg3: memref<8x12xf32, #tpu.memory_space<vmem>>, %arg4: memref<8x1xf32, #tpu.memory_space<vmem>>, %arg5: memref<1x8x128xf32, #tpu.memory_space<vmem>>) attributes {dimension_semantics = [#tpu.dimension_semantics<parallel>, #tpu.dimension_semantics<parallel>], iteration_bounds = array<i64: 2, 1>, scalar_prefetch = 0 : i64, scratch_operands = 0 : i64, tpu.core_type = #tpu.core_type<tc>, window_params = [{transform_indices = @transform_0, window_bounds = array<i64: 1, 1, 4, 130>}, {pipeline_mode = #tpu.pipeline_mode<synchronous>, transform_indices = @transform_1, window_bounds = array<i64: 8, 12>}, {pipeline_mode = #tpu.pipeline_mode<synchronous>, transform_indices = @transform_2, window_bounds = array<i64: 8, 1>}, {transform_indices = @transform_3, window_bounds = array<i64: 1, 8, 128>}]} {
    %c0 = arith.constant 0 : index
    %c0_0 = arith.constant 0 : index
    %c0_1 = arith.constant 0 : index
    %c0_2 = arith.constant 0 : index
    %0 = vector.load %arg2[%c0, %c0_0, %c0_1, %c0_2] : memref<1x1x4x130xf32, #tpu.memory_space<vmem>>, vector<1x1x4x130xf32>
    %1 = vector.shape_cast %0 : vector<1x1x4x130xf32> to vector<4x130xf32>
    %cst = arith.constant 0.000000e+00 : f32
    %2 = vector.broadcast %cst : f32 to vector<4x130xf32>
    %3 = arith.maximumf %1, %2 : vector<4x130xf32>
    %4 = vector.extract_strided_slice %3 {offsets = [0, 0], sizes = [4, 128], strides = [1, 1]} : vector<4x130xf32> to vector<4x128xf32>
    %5 = vector.extract_strided_slice %3 {offsets = [0, 1], sizes = [4, 128], strides = [1, 1]} : vector<4x130xf32> to vector<4x128xf32>
    %6 = vector.extract_strided_slice %3 {offsets = [0, 2], sizes = [4, 128], strides = [1, 1]} : vector<4x130xf32> to vector<4x128xf32>
    %7 = tpu.concatenate %4, %5, %6 in 0 : vector<4x128xf32>, vector<4x128xf32>, vector<4x128xf32> -> vector<12x128xf32>
    %c0_3 = arith.constant 0 : index
    %c0_4 = arith.constant 0 : index
    %8 = vector.load %arg3[%c0_3, %c0_4] : memref<8x12xf32, #tpu.memory_space<vmem>>, vector<8x12xf32>
    %cst_5 = arith.constant dense<0.000000e+00> : vector<8x128xf32>
    %9 = tpu.matmul %8, %7, %cst_5 {dimension_numbers = #tpu.dot_dimension_numbers<[1], [0], [0], [1], [0, 0, 1, 1], [], []>} : vector<8x12xf32>, vector<12x128xf32>, vector<8x128xf32> -> vector<8x128xf32>
    %c0_6 = arith.constant 0 : index
    %c0_7 = arith.constant 0 : index
    %10 = vector.load %arg4[%c0_6, %c0_7] : memref<8x1xf32, #tpu.memory_space<vmem>>, vector<8x1xf32>
    %11 = vector.broadcast %10 : vector<8x1xf32> to vector<8x128xf32>
    %12 = arith.addf %9, %11 : vector<8x128xf32>
    %c0_8 = arith.constant 0 : index
    %c0_9 = arith.constant 0 : index
    %c0_10 = arith.constant 0 : index
    %13 = vector.load %arg5[%c0_8, %c0_9, %c0_10] : memref<1x8x128xf32, #tpu.memory_space<vmem>>, vector<1x8x128xf32>
    %14 = vector.shape_cast %13 : vector<1x8x128xf32> to vector<8x128xf32>
    %15 = vector.shape_cast %12 : vector<8x128xf32> to vector<1x8x128xf32>
    tpu.vector_store %arg5[%c0_8, %c0_9, %c0_10], %15 {strides = array<i32>} : memref<1x8x128xf32, #tpu.memory_space<vmem>>, vector<1x8x128xf32>,
    return
  }
  func.func @transform_0(%arg0: i32, %arg1: i32) -> (i32, i32, i32, i32) {
    %c0_i32 = arith.constant 0 : i32
    %c0_i32_0 = arith.constant 0 : i32
    %c0_i32_1 = arith.constant 0 : i32
    return %arg1, %arg0, %c0_i32, %c0_i32_0 : i32, i32, i32, i32
  }
  func.func @transform_1(%arg0: i32, %arg1: i32) -> (i32, i32) {
    %c0_i32 = arith.constant 0 : i32
    %c0_i32_0 = arith.constant 0 : i32
    %c0_i32_1 = arith.constant 0 : i32
    return %c0_i32, %c0_i32_0 : i32, i32
  }
  func.func @transform_2(%arg0: i32, %arg1: i32) -> (i32, i32) {
    %c0_i32 = arith.constant 0 : i32
    %c0_i32_0 = arith.constant 0 : i32
    %c0_i32_1 = arith.constant 0 : i32
    return %c0_i32, %c0_i32_0 : i32, i32
  }
  func.func @transform_3(%arg0: i32, %arg1: i32) -> (i32, i32, i32) {
    %c0_i32 = arith.constant 0 : i32
    %c0_i32_0 = arith.constant 0 : i32
    return %arg0, %c0_i32, %arg1 : i32, i32, i32
  }
}

module attributes {stable_mosaic.version = 11 : i64} {
  func.func @_rce_conv_kernel(%arg0: i32, %arg1: i32, %arg2: memref<1x1x4x130xf32, #tpu.memory_space<vmem>>, %arg3: memref<8x12xf32, #tpu.memory_space<vmem>>, %arg4: memref<8x1xf32, #tpu.memory_space<vmem>>, %arg5: memref<1x8x128xf32, #tpu.memory_space<vmem>>) attributes {dimension_semantics = [#tpu.dimension_semantics<parallel>, #tpu.dimension_semantics<parallel>], iteration_bounds = array<i64: 2, 1>, scalar_prefetch = 0 : i64, scratch_operands = 0 : i64, tpu.core_type = #tpu.core_type<tc>, window_params = [{transform_indices = @transform_0, window_bounds = array<i64: 1, 1, 4, 130>}, {pipeline_mode = #tpu.pipeline_mode<synchronous>, transform_indices = @transform_1, window_bounds = array<i64: 8, 12>}, {pipeline_mode = #tpu.pipeline_mode<synchronous>, transform_indices = @transform_2, window_bounds = array<i64: 8, 1>}, {transform_indices = @transform_3, window_bounds = array<i64: 1, 8, 128>}]} {
    %c0 = arith.constant 0 : index
    %c0_0 = arith.constant 0 : index
    %c0_1 = arith.constant 0 : index
    %c0_2 = arith.constant 0 : index
    %0 = vector.load %arg2[%c0, %c0_0, %c0_1, %c0_2] : memref<1x1x4x130xf32, #tpu.memory_space<vmem>>, vector<1x1x4x130xf32>
    %1 = vector.shape_cast %0 : vector<1x1x4x130xf32> to vector<4x130xf32>
    %cst = arith.constant 0.000000e+00 : f32
    %2 = vector.broadcast %cst : f32 to vector<4x130xf32>
    %3 = arith.maximumf %1, %2 : vector<4x130xf32>
    %4 = vector.extract_strided_slice %3 {offsets = [0, 0], sizes = [4, 128], strides = [1, 1]} : vector<4x130xf32> to vector<4x128xf32>
    %5 = vector.extract_strided_slice %3 {offsets = [0, 1], sizes = [4, 128], strides = [1, 1]} : vector<4x130xf32> to vector<4x128xf32>
    %6 = vector.extract_strided_slice %3 {offsets = [0, 2], sizes = [4, 128], strides = [1, 1]} : vector<4x130xf32> to vector<4x128xf32>
    %7 = tpu.concatenate %4, %5, %6 in 0 : vector<4x128xf32>, vector<4x128xf32>, vector<4x128xf32> -> vector<12x128xf32>
    %c0_3 = arith.constant 0 : index
    %c0_4 = arith.constant 0 : index
    %8 = vector.load %arg3[%c0_3, %c0_4] : memref<8x12xf32, #tpu.memory_space<vmem>>, vector<8x12xf32>
    %cst_5 = arith.constant dense<0.000000e+00> : vector<8x128xf32>
    %9 = tpu.matmul %8, %7, %cst_5 {dimension_numbers = #tpu.dot_dimension_numbers<[1], [0], [0], [1], [0, 0, 1, 1], [], []>} : vector<8x12xf32>, vector<12x128xf32>, vector<8x128xf32> -> vector<8x128xf32>
    %c0_6 = arith.constant 0 : index
    %c0_7 = arith.constant 0 : index
    %10 = vector.load %arg4[%c0_6, %c0_7] : memref<8x1xf32, #tpu.memory_space<vmem>>, vector<8x1xf32>
    %11 = vector.broadcast %10 : vector<8x1xf32> to vector<8x128xf32>
    %12 = arith.addf %9, %11 : vector<8x128xf32>
    %c0_8 = arith.constant 0 : index
    %c0_9 = arith.constant 0 : index
    %c0_10 = arith.constant 0 : index
    %13 = vector.load %arg5[%c0_8, %c0_9, %c0_10] : memref<1x8x128xf32, #tpu.memory_space<vmem>>, vector<1x8x128xf32>
    %14 = vector.shape_cast %13 : vector<1x8x128xf32> to vector<8x128xf32>
    %15 = vector.shape_cast %12 : vector<8x128xf32> to vector<1x8x128xf32>
    tpu.vector_store %arg5[%c0_8, %c0_9, %c0_10], %15 {strides = array<i32>} : memref<1x8x128xf32, #tpu.memory_space<vmem>>, vector<1x8x128xf32>,
    return
  }
  func.func @transform_0(%arg0: i32, %arg1: i32) -> (i32, i32, i32, i32) {
    %c0_i32 = arith.constant 0 : i32
    %c0_i32_0 = arith.constant 0 : i32
    %c0_i32_1 = arith.constant 0 : i32
    return %arg1, %arg0, %c0_i32, %c0_i32_0 : i32, i32, i32, i32
  }
  func.func @transform_1(%arg0: i32, %arg1: i32) -> (i32, i32) {
    %c0_i32 = arith.constant 0 : i32
    %c0_i32_0 = arith.constant 0 : i32
    %c0_i32_1 = arith.constant 0 : i32
    return %c0_i32, %c0_i32_0 : i32, i32
  }
  func.func @transform_2(%arg0: i32, %arg1: i32) -> (i32, i32) {
    %c0_i32 = arith.constant 0 : i32
    %c0_i32_0 = arith.constant 0 : i32
    %c0_i32_1 = arith.constant 0 : i32
    return %c0_i32, %c0_i32_0 : i32, i32
  }
  func.func @transform_3(%arg0: i32, %arg1: i32) -> (i32, i32, i32) {
    %c0_i32 = arith.constant 0 : i32
    %c0_i32_0 = arith.constant 0 : i32
    return %arg0, %c0_i32, %arg1 : i32, i32, i32
  }
}

</mosaic_0001>

<llo_original>
// kernel: tpu_custom_call.1
$region0: #{tpu_custom_call.1}
  #allocation0 [shape = 'u32[]', space=smem, size = 0x4, offset = 0x4, fixed_abs, tag = 'smem constant byte address 0x4 - core index']
  #allocation1 [shape = 'u32[144,128]{1,0:T(1,128)}', space=vmem, size = 0x12000, scoped, tag = 'internal scratch']
  %s0 = inlined_call_operand.hbm [shape: f32[1,2,4,130], index: 0, kind: input, shape index: {}]
  %s1 = inlined_call_operand.vmem [shape: f32[8,12], index: 1, kind: input, shape index: {}]
  %s2 = inlined_call_operand.vmem [shape: f32[8,1], index: 2, kind: input, shape index: {}]
  %s3 = inlined_call_operand.hbm [shape: f32[2,8,128], index: 3, kind: output, shape index: {}]
  %s4 = sld [smem:[#allocation0]]
  $region49: #{tpu_custom_call.1} parent=0
    _
  %s6 = ssub.s32 1, %s4
  %s7 = scalar_select 0, %s6, %s4
  $region1: #{tpu_custom_call.1} parent=0
    #allocation2 [shape = 'u8[8192]{0}', space=vmem, size = 0x2000, scoped, tag = 'input window, operand 0']
    #allocation3 [shape = 's32[2]{0}', space=sflag, size = 0x8, scoped, tag = 'scoped memory for tpu_custom_call.1']
    #allocation4 [shape = 's32[2]{0}', space=sflag, size = 0x8, scoped, tag = 'scoped memory for tpu_custom_call.1']
    #allocation5 [shape = 'u8[8192]{0}', space=vmem, size = 0x2000, scoped, tag = 'output window, operand 0']
    %8 = vsyncpa [#allocation3], 0
    %s9 = scalar_lea.sflag [#allocation3], 1
    %10 = vsyncpa %s9, 0
    %11 = vsyncpa [#allocation4], 0
    %s12 = scalar_lea.sflag [#allocation4], 1
    %13 = vsyncpa %s12, 0
    loop: start=0, step=1, limit=4
    $region2: #{tpu_custom_call.1} parent=1 // loop_pre_header
      _
    $region3: #{tpu_custom_call.1} parent=1 // loop_header
      %s15 = sphi 0, %s19
      %p16 = scmp.ge.s32.totalorder %s15, 4
      %s22 = sphi 0, %s34
      %s23 = sphi 0, %s30
      %s24 = sphi 0, %s22
      %s25 = sphi 0, %s23
      %s26 = sphi 0, %s24
      %s27 = sphi 0, %s25
      %s39 = sphi 0, %s41
      %s42 = sphi 0, %s39
      %s43 = sphi 0, %s42
      %s59 = sphi 0, %s43
      %s63 = sphi 0, %s63
      %s65 = sphi 0, %s63
      %s66 = sphi 0, %s65
      %s80 = sphi 0, %s66
      %s84 = sphi 0, %s84
      %s86 = sphi 0, %s84
      %s87 = sphi 0, %s86
      %s101 = sphi 0, %s87
      %s109 = sphi 0, %s111
      %s112 = sphi 0, %s109
      %s113 = sphi 0, %s112
      %s129 = sphi 0, %s113
    $region4: #{tpu_custom_call.1} parent=1 // loop_header_branch
      %18 = sbr.rel (%p16) target = $region8
    $region5: #{tpu_custom_call.1} parent=1 // loop_body
      %s20 = ssub.s32 %s15, 1
      %s21 = ssub.s32 %s15, 2
      %s28 = sadd.s32 1, %s23
      %p29 = scmp.ge.s32.totalorder %s28, 1
      %s30 = scalar_select %p29, 0, %s28
      %s31 = sadd.s32 1, %s22
      %s32 = scalar_select %p29, %s31, %s22
      %p33 = scmp.ge.s32.totalorder %s32, 2
      %s34 = scalar_select %p33, 0, %s32
      %s35 = ssub.s32 %s23, %s30
      %s36 = ssub.s32 %s22, %s34
      %s37 = sor.u32 %s35, %s36
      %p38 = scmp.eq.s32.totalorder %s37, 0
      %s40 = sadd.s32 %s39, 1
      %s41 = scalar_select %p38, %s39, %s40
      %p44 = pneg %p38
      %p45 = scmp.eq.s32.totalorder %s15, 1
      %p46 = por %p44, %p45
      %p47 = scmp.ne.s32.totalorder %s39, %s42
      %p48 = scmp.eq.s32.totalorder %s15, 0
      %p49 = por %p47, %p48
      %p50 = scmp.ne.s32.totalorder %s39, %s42
      %p51 = scmp.eq.s32.totalorder %s20, 1
      %p52 = por %p50, %p51
      %p53 = scmp.ne.s32.totalorder %s42, %s43
      %p54 = scmp.eq.s32.totalorder %s20, 0
      %p55 = por %p53, %p54
      %p56 = scmp.ne.s32.totalorder %s42, %s43
      %p57 = scmp.eq.s32.totalorder %s21, 1
      %p58 = por %p56, %p57
      %p60 = scmp.ne.s32.totalorder %s43, %s59
      %p61 = scmp.eq.s32.totalorder %s21, 0
      %p62 = por %p60, %p61
      %s64 = sadd.s32 %s63, 1
      %p67 = scmp.eq.s32.totalorder %s15, 1
      %p68 = scmp.ne.s32.totalorder %s63, %s65
      %p69 = scmp.eq.s32.totalorder %s15, 0
      %p70 = por %p68, %p69
      %p71 = scmp.ne.s32.totalorder %s63, %s65
      %p72 = scmp.eq.s32.totalorder %s20, 1
      %p73 = por %p71, %p72
      %p74 = scmp.ne.s32.totalorder %s65, %s66
      %p75 = scmp.eq.s32.totalorder %s20, 0
      %p76 = por %p74, %p75
      %p77 = scmp.ne.s32.totalorder %s65, %s66
      %p78 = scmp.eq.s32.totalorder %s21, 1
      %p79 = por %p77, %p78
      %p81 = scmp.ne.s32.totalorder %s66, %s80
      %p82 = scmp.eq.s32.totalorder %s21, 0
      %p83 = por %p81, %p82
      %s85 = sadd.s32 %s84, 1
      %p88 = scmp.eq.s32.totalorder %s15, 1
      %p89 = scmp.ne.s32.totalorder %s84, %s86
      %p90 = scmp.eq.s32.totalorder %s15, 0
      %p91 = por %p89, %p90
      %p92 = scmp.ne.s32.totalorder %s84, %s86
      %p93 = scmp.eq.s32.totalorder %s20, 1
      %p94 = por %p92, %p93
      %p95 = scmp.ne.s32.totalorder %s86, %s87
      %p96 = scmp.eq.s32.totalorder %s20, 0
      %p97 = por %p95, %p96
      %p98 = scmp.ne.s32.totalorder %s86, %s87
      %p99 = scmp.eq.s32.totalorder %s21, 1
      %p100 = por %p98, %p99
      %p102 = scmp.ne.s32.totalorder %s87, %s101
      %p103 = scmp.eq.s32.totalorder %s21, 0
      %p104 = por %p102, %p103
      %s105 = ssub.s32 %s22, %s34
      %s106 = ssub.s32 %s23, %s30
      %s107 = sor.u32 %s105, %s106
      %p108 = scmp.eq.s32.totalorder %s107, 0
      %s110 = sadd.s32 %s109, 1
      %s111 = scalar_select %p108, %s109, %s110
      %p114 = pneg %p108
      %p115 = scmp.eq.s32.totalorder %s15, 1
      %p116 = por %p114, %p115
      %p117 = scmp.ne.s32.totalorder %s109, %s112
      %p118 = scmp.eq.s32.totalorder %s15, 0
      %p119 = por %p117, %p118
      %p120 = scmp.ne.s32.totalorder %s109, %s112
      %p121 = scmp.eq.s32.totalorder %s20, 1
      %p122 = por %p120, %p121
      %p123 = scmp.ne.s32.totalorder %s112, %s113
      %p124 = scmp.eq.s32.totalorder %s20, 0
      %p125 = por %p123, %p124
      %p126 = scmp.ne.s32.totalorder %s112, %s113
      %p127 = scmp.eq.s32.totalorder %s21, 1
      %p128 = por %p126, %p127
      %p130 = scmp.ne.s32.totalorder %s113, %s129
      %p131 = scmp.eq.s32.totalorder %s21, 0
      %p132 = por %p130, %p131
      %p133 = scmp.le.s32.totalorder 1, %s15
      %p134 = scmp.lt.s32.totalorder %s15, 3
      %p135 = pnand %p133, %p134
      %p136 = pneg %p135
      // Predicated region
      $region9: #{tpu_custom_call.1} parent=5 // pred_check
        _
      $region10: #{tpu_custom_call.1} parent=5 // pred_check_branch
        %138 = sbr.rel (%p135) target = $region12
      $region11: #{tpu_custom_call.1} parent=5 // pred_region
        %s139 = ssub.s32 %s15, 1
        // Predicated region
        $region13: #{tpu_custom_call.1} parent=11 // pred_check
          %p140 = pneg %p76
        $region14: #{tpu_custom_call.1} parent=11 // pred_check_branch
          %142 = sbr.rel (%p140) target = $region16
        $region15: #{tpu_custom_call.1} parent=11 // pred_region
          _
        $region16: #{tpu_custom_call.1} parent=11 // pred_fallthru
          _
        // Predicated region
        $region17: #{tpu_custom_call.1} parent=11 // pred_check
          %p143 = pneg %p97
        $region18: #{tpu_custom_call.1} parent=11 // pred_check_branch
          %145 = sbr.rel (%p143) target = $region20
        $region19: #{tpu_custom_call.1} parent=11 // pred_region
          _
        $region20: #{tpu_custom_call.1} parent=11 // pred_fallthru
          _
      $region12: #{tpu_custom_call.1} parent=5 // pred_fallthru
        _
      %p146 = scmp.lt.s32.totalorder %s15, 2
      // Predicated region
      $region21: #{tpu_custom_call.1} parent=5 // pred_check
        %p147 = pneg %p146
      $region22: #{tpu_custom_call.1} parent=5 // pred_check_branch
        %149 = sbr.rel (%p147) target = $region24
      $region23: #{tpu_custom_call.1} parent=5 // pred_region
        // Predicated region
        $region25: #{tpu_custom_call.1} parent=23 // pred_check
          %p150 = pneg %p49
        $region26: #{tpu_custom_call.1} parent=23 // pred_check_branch
          %152 = sbr.rel (%p150) target = $region28
        $region27: #{tpu_custom_call.1} parent=23 // pred_region
          %s153 = sand.u32 %s39, 1
          %s154 = scalar_lea.sflag [#allocation3], %s153
          %s155 = sand.u32 %s39, 1
          %s156 = smul.addr %s155, 8
          %s157 = scalar_lea.vmem [#allocation2], %s156
          %s159 = ssub.s32 128, 128
          %160 = vsyncadd %s154, %s159
          %s161 = smul.addr %s22, 2
          %s162 = smul.addr %s23, 4
          %s163 = sadd.s32 %s161, %s162
          %s164 = smul.addr %s163, 64
          %s165 = scalar_lea.hbm %s0, %s164
          %s167 = sshll.u32 %s157, 4
          %s168 = int_to_ptr.vmem [resolvable:$true] %s167
          %170 = dma.hbm_to_vmem [thread:$0]  %s165, 128, %s168, %s154
        $region28: #{tpu_custom_call.1} parent=23 // pred_fallthru
          _
      $region24: #{tpu_custom_call.1} parent=5 // pred_fallthru
        _
      %p171 = scmp.le.s32.totalorder 1, %s15
      %p172 = scmp.lt.s32.totalorder %s15, 3
      %p173 = pnand %p171, %p172
      %p174 = pneg %p173
      // Predicated region
      $region29: #{tpu_custom_call.1} parent=5 // pred_check
        _
      $region30: #{tpu_custom_call.1} parent=5 // pred_check_branch
        %176 = sbr.rel (%p173) target = $region32
      $region31: #{tpu_custom_call.1} parent=5 // pred_region
        %s177 = ssub.s32 %s15, 1
        %s178 = sand.u32 %s42, 1
        %s179 = scalar_lea.sflag [#allocation3], %s178
        %s180 = sand.u32 %s42, 1
        %s181 = smul.addr %s180, 8
        %s182 = scalar_lea.vmem [#allocation2], %s181
        // Predicated region
        $region33: #{tpu_custom_call.1} parent=31 // pred_check
          %p183 = pneg %p55
        $region34: #{tpu_custom_call.1} parent=31 // pred_check_branch
          %185 = sbr.rel (%p183) target = $region36
        $region35: #{tpu_custom_call.1} parent=31 // pred_region
          %186 = dma.done %s179, 128
        $region36: #{tpu_custom_call.1} parent=31 // pred_fallthru
          _
        %s187 = sand.u32 %s42, 1
        %s188 = scalar_lea.sflag [#allocation3], %s187
        %s189 = sand.u32 %s42, 1
        %s190 = smul.addr %s189, 8
        %s191 = scalar_lea.vmem [#allocation2], %s190
        %p192 = pneg %p55
        %p193 = pneg %p52
        %p194 = pneg %p76
        %p195 = pneg %p73
        %p196 = pneg %p97
        %p197 = pneg %p94
        %p198 = pneg %p125
        %p199 = pneg %p122
        %s200 = sand.u32 %s112, 1
        %s201 = scalar_lea.sflag [#allocation4], %s200
        %s202 = sand.u32 %s112, 1
        %s203 = smul.addr %s202, 8
        %s204 = scalar_lea.vmem [#allocation5], %s203
        %v205 = vld [vmem:[%s182] sm:$0xff]
        %v206 = vmax.f32 %v205, 0.0
        %v208 = vcombine.low %v206, %v206
        %209 = vrot.lane.b32.xlu0 %v208, 127
        %v210 = vpop.permute.xlu0 %209
        %211 = vrot.lane.b32.xlu0 %v206, 127
        %v212 = vpop.permute.xlu0 %211
        %vm213 = vcmask 1039360
        %v214 = vsel %vm213, %v210, %v212
        %v216 = vcombine.high %v206, %v206
        %217 = vrot.lane.b32.xlu0 %v206, 126
        %v218 = vpop.permute.xlu0 %217
        %219 = vrot.lane.b32.xlu0 %v216, 126
        %v220 = vpop.permute.xlu0 %219
        %vm221 = vcmask 1031168
        %v222 = vsel %vm221, %v218, %v220
        %vm223 = vcmask 1043456
        %v224 = vsel %vm223, %v206, %v214
        %v225 = vld [vmem:[%s1] sm:$0xff]
        %v226 = vld [vmem:[%s2] sm:$0xff]
        %228 = vset.pattern.permute.xlu0 0
        %229 = vperm.xlu0 %228, %v226
        %v230 = vpop.permute.xlu0 %229
        %vm232 = vcmask 97280
        %v234 = vsel %vm232, %v225, 0
        %v236 = vsel %vm223, %v222, 0
        %238 = vmatprep.subr.mxu0 0.0
        %239 = vmatpush1.msra.mxu0 %v224
        %240 = vmatprep.subr.mxu0 0.0
        %241 = vmatpush1.msra.mxu0 %v236
        %242 = vmatprep.subr.mxu0 0.0
        %243 = vmatpush1.msra.mxu0 0.0
        %244 = vmatprep.subr.mxu0 0.0
        %245 = vmatpush1.msra.mxu0 0.0
        %246 = vmatprep.subr.mxu0 0.0
        %247 = vmatpush1.msra.mxu0 0.0
        %248 = vmatprep.subr.mxu0 0.0
        %249 = vmatpush1.msra.mxu0 0.0
        %250 = vmatprep.subr.mxu0 0.0
        %251 = vmatpush1.msra.mxu0 0.0
        %252 = vmatprep.subr.mxu0 0.0
        %253 = vmatpush1.msra.mxu0 0.0
        %254 = vmatprep.subr.mxu0 0.0
        %255 = vmatpush1.msra.mxu0 0.0
        %256 = vmatprep.subr.mxu0 0.0
        %257 = vmatpush1.msra.mxu0 0.0
        %258 = vmatprep.subr.mxu0 0.0
        %259 = vmatpush1.msra.mxu0 0.0
        %260 = vmatprep.subr.mxu0 0.0
        %261 = vmatpush1.msra.mxu0 0.0
        %262 = vmatprep.subr.mxu0 0.0
        %263 = vmatpush1.msra.mxu0 0.0
        %264 = vmatprep.subr.mxu0 0.0
        %265 = vmatpush1.msra.mxu0 0.0
        %266 = vmatprep.subr.mxu0 0.0
        %267 = vmatpush1.msra.mxu0 0.0
        %268 = vmatprep.subr.mxu0 0.0
        %269 = vmatpush1.msra.mxu0 0.0
        %270 = vmatprep.subr.mxu0 0.0
        %271 = vmatpush1.msra.mxu0 0.0
        %272 = vmatprep.subr.mxu0 0.0
        %273 = vmatpush1.msra.mxu0 0.0
        %274 = vmatprep.subr.mxu0 0.0
        %275 = vmatpush1.msra.mxu0 0.0
        %276 = vmatprep.subr.mxu0 0.0
        %277 = vmatpush1.msra.mxu0 0.0
        %278 = vmatprep.subr.mxu0 0.0
        %279 = vmatpush1.msra.mxu0 0.0
        %280 = vmatprep.subr.mxu0 0.0
        %281 = vmatpush1.msra.mxu0 0.0
        %282 = vmatprep.subr.mxu0 0.0
        %283 = vmatpush1.msra.mxu0 0.0
        %284 = vmatprep.subr.mxu0 0.0
        %285 = vmatpush1.msra.mxu0 0.0
        %286 = vmatprep.subr.mxu0 0.0
        %287 = vmatpush1.msra.mxu0 0.0
        %288 = vmatprep.subr.mxu0 0.0
        %289 = vmatpush1.msra.mxu0 0.0
        %290 = vmatprep.subr.mxu0 0.0
        %291 = vmatpush1.msra.mxu0 0.0
        %292 = vmatprep.subr.mxu0 0.0
        %293 = vmatpush1.msra.mxu0 0.0
        %294 = vmatprep.subr.mxu0 0.0
        %295 = vmatpush1.msra.mxu0 0.0
        %296 = vmatprep.subr.mxu0 0.0
        %297 = vmatpush1.msra.mxu0 0.0
        %298 = vmatprep.subr.mxu0 0.0
        %299 = vmatpush1.msra.mxu0 0.0
        %300 = vmatprep.subr.mxu0 0.0
        %301 = vmatpush1.msra.mxu0 0.0
        %302 = vmatprep.mubr.f32.mxu0 0.0
        %303 = vmatmul.mubr.f32.gmra.mrb[0].mxu0 %v234
        %v304 = vpop.f32.mrb[0].mxu0
        %v305 = vadd.f32 %v230, %v304
        %v306 = vpop.f32.mrb[0].mxu0
        %307 = vdwg.mxu0
        %308 = vst [vmem:[%s204] sm:$0xff] %v305
        %s309 = sand.u32 %s112, 1
        %s310 = scalar_lea.sflag [#allocation4], %s309
        %s311 = sand.u32 %s112, 1
        %s312 = smul.addr %s311, 8
        %s313 = scalar_lea.vmem [#allocation5], %s312
        // Predicated region
        $region37: #{tpu_custom_call.1} parent=31 // pred_check
          %p314 = pneg %p122
        $region38: #{tpu_custom_call.1} parent=31 // pred_check_branch
          %316 = sbr.rel (%p314) target = $region40
        $region39: #{tpu_custom_call.1} parent=31 // pred_region
          %s318 = ssub.s32 128, 128
          %319 = vsyncadd %s310, %s318
          %s320 = sadd.s32 %s25, %s24
          %s321 = smul.addr %s320, 128
          %s322 = scalar_lea.hbm %s3, %s321
          %s324 = sshll.u32 %s313, 4
          %s325 = int_to_ptr.vmem [resolvable:$true] %s324
          %327 = dma.vmem_to_hbm [thread:$0]  %s325, 128, %s322, %s310
        $region40: #{tpu_custom_call.1} parent=31 // pred_fallthru
          _
      $region32: #{tpu_custom_call.1} parent=5 // pred_fallthru
        _
      %p328 = scmp.le.s32.totalorder 2, %s15
      // Predicated region
      $region41: #{tpu_custom_call.1} parent=5 // pred_check
        %p329 = pneg %p328
      $region42: #{tpu_custom_call.1} parent=5 // pred_check_branch
        %331 = sbr.rel (%p329) target = $region44
      $region43: #{tpu_custom_call.1} parent=5 // pred_region
        %s332 = ssub.s32 %s15, 2
        // Predicated region
        $region45: #{tpu_custom_call.1} parent=43 // pred_check
          %p333 = pneg %p128
        $region46: #{tpu_custom_call.1} parent=43 // pred_check_branch
          %335 = sbr.rel (%p333) target = $region48
        $region47: #{tpu_custom_call.1} parent=43 // pred_region
          %s336 = sand.u32 %s113, 1
          %s337 = scalar_lea.sflag [#allocation4], %s336
          %s338 = sand.u32 %s113, 1
          %s339 = smul.addr %s338, 8
          %s340 = scalar_lea.vmem [#allocation5], %s339
          %341 = dma.done %s337, 128
        $region48: #{tpu_custom_call.1} parent=43 // pred_fallthru
          _
      $region44: #{tpu_custom_call.1} parent=5 // pred_fallthru
        _
    $region6: #{tpu_custom_call.1} parent=1 // loop_footer
      %s19 = sadd.s32 1, %s15
    $region7: #{tpu_custom_call.1} parent=1 // loop_footer_branch
      %14 = sbr.rel target = $region3
    $region8: #{tpu_custom_call.1} parent=1 // loop_exit
      _
    %342 = vsyncpa [#allocation3], 1
    %s343 = scalar_lea.sflag [#allocation3], 1
    %344 = vsyncpa %s343, 1
    %345 = vsyncpa [#allocation4], 1
    %s346 = scalar_lea.sflag [#allocation4], 1
    %347 = vsyncpa %s346, 1

// kernel: tpu_custom_call.1
$region0: #{tpu_custom_call.1}
  #allocation0 [shape = 'u32[]', space=smem, size = 0x4, offset = 0x4, fixed_abs, tag = 'smem constant byte address 0x4 - core index']
  #allocation1 [shape = 'u32[144,128]{1,0:T(1,128)}', space=vmem, size = 0x12000, scoped, tag = 'internal scratch']
  %s0 = inlined_call_operand.hbm [shape: f32[1,2,4,130], index: 0, kind: input, shape index: {}]
  %s1 = inlined_call_operand.vmem [shape: f32[8,12], index: 1, kind: input, shape index: {}]
  %s2 = inlined_call_operand.vmem [shape: f32[8,1], index: 2, kind: input, shape index: {}]
  %s3 = inlined_call_operand.hbm [shape: f32[2,8,128], index: 3, kind: output, shape index: {}]
  %s4 = sld [smem:[#allocation0]]
  $region49: #{tpu_custom_call.1} parent=0
    _
  %s6 = ssub.s32 1, %s4
  %s7 = scalar_select 0, %s6, %s4
  $region1: #{tpu_custom_call.1} parent=0
    #allocation2 [shape = 'u8[8192]{0}', space=vmem, size = 0x2000, scoped, tag = 'input window, operand 0']
    #allocation3 [shape = 's32[2]{0}', space=sflag, size = 0x8, scoped, tag = 'scoped memory for tpu_custom_call.1']
    #allocation4 [shape = 's32[2]{0}', space=sflag, size = 0x8, scoped, tag = 'scoped memory for tpu_custom_call.1']
    #allocation5 [shape = 'u8[8192]{0}', space=vmem, size = 0x2000, scoped, tag = 'output window, operand 0']
    %8 = vsyncpa [#allocation3], 0
    %s9 = scalar_lea.sflag [#allocation3], 1
    %10 = vsyncpa %s9, 0
    %11 = vsyncpa [#allocation4], 0
    %s12 = scalar_lea.sflag [#allocation4], 1
    %13 = vsyncpa %s12, 0
    loop: start=0, step=1, limit=4
    $region2: #{tpu_custom_call.1} parent=1 // loop_pre_header
      _
    $region3: #{tpu_custom_call.1} parent=1 // loop_header
      %s15 = sphi 0, %s19
      %p16 = scmp.ge.s32.totalorder %s15, 4
      %s22 = sphi 0, %s34
      %s23 = sphi 0, %s30
      %s24 = sphi 0, %s22
      %s25 = sphi 0, %s23
      %s26 = sphi 0, %s24
      %s27 = sphi 0, %s25
      %s39 = sphi 0, %s41
      %s42 = sphi 0, %s39
      %s43 = sphi 0, %s42
      %s59 = sphi 0, %s43
      %s63 = sphi 0, %s63
      %s65 = sphi 0, %s63
      %s66 = sphi 0, %s65
      %s80 = sphi 0, %s66
      %s84 = sphi 0, %s84
      %s86 = sphi 0, %s84
      %s87 = sphi 0, %s86
      %s101 = sphi 0, %s87
      %s109 = sphi 0, %s111
      %s112 = sphi 0, %s109
      %s113 = sphi 0, %s112
      %s129 = sphi 0, %s113
    $region4: #{tpu_custom_call.1} parent=1 // loop_header_branch
      %18 = sbr.rel (%p16) target = $region8
    $region5: #{tpu_custom_call.1} parent=1 // loop_body
      %s20 = ssub.s32 %s15, 1
      %s21 = ssub.s32 %s15, 2
      %s28 = sadd.s32 1, %s23
      %p29 = scmp.ge.s32.totalorder %s28, 1
      %s30 = scalar_select %p29, 0, %s28
      %s31 = sadd.s32 1, %s22
      %s32 = scalar_select %p29, %s31, %s22
      %p33 = scmp.ge.s32.totalorder %s32, 2
      %s34 = scalar_select %p33, 0, %s32
      %s35 = ssub.s32 %s23, %s30
      %s36 = ssub.s32 %s22, %s34
      %s37 = sor.u32 %s35, %s36
      %p38 = scmp.eq.s32.totalorder %s37, 0
      %s40 = sadd.s32 %s39, 1
      %s41 = scalar_select %p38, %s39, %s40
      %p44 = pneg %p38
      %p45 = scmp.eq.s32.totalorder %s15, 1
      %p46 = por %p44, %p45
      %p47 = scmp.ne.s32.totalorder %s39, %s42
      %p48 = scmp.eq.s32.totalorder %s15, 0
      %p49 = por %p47, %p48
      %p50 = scmp.ne.s32.totalorder %s39, %s42
      %p51 = scmp.eq.s32.totalorder %s20, 1
      %p52 = por %p50, %p51
      %p53 = scmp.ne.s32.totalorder %s42, %s43
      %p54 = scmp.eq.s32.totalorder %s20, 0
      %p55 = por %p53, %p54
      %p56 = scmp.ne.s32.totalorder %s42, %s43
      %p57 = scmp.eq.s32.totalorder %s21, 1
      %p58 = por %p56, %p57
      %p60 = scmp.ne.s32.totalorder %s43, %s59
      %p61 = scmp.eq.s32.totalorder %s21, 0
      %p62 = por %p60, %p61
      %s64 = sadd.s32 %s63, 1
      %p67 = scmp.eq.s32.totalorder %s15, 1
      %p68 = scmp.ne.s32.totalorder %s63, %s65
      %p69 = scmp.eq.s32.totalorder %s15, 0
      %p70 = por %p68, %p69
      %p71 = scmp.ne.s32.totalorder %s63, %s65
      %p72 = scmp.eq.s32.totalorder %s20, 1
      %p73 = por %p71, %p72
      %p74 = scmp.ne.s32.totalorder %s65, %s66
      %p75 = scmp.eq.s32.totalorder %s20, 0
      %p76 = por %p74, %p75
      %p77 = scmp.ne.s32.totalorder %s65, %s66
      %p78 = scmp.eq.s32.totalorder %s21, 1
      %p79 = por %p77, %p78
      %p81 = scmp.ne.s32.totalorder %s66, %s80
      %p82 = scmp.eq.s32.totalorder %s21, 0
      %p83 = por %p81, %p82
      %s85 = sadd.s32 %s84, 1
      %p88 = scmp.eq.s32.totalorder %s15, 1
      %p89 = scmp.ne.s32.totalorder %s84, %s86
      %p90 = scmp.eq.s32.totalorder %s15, 0
      %p91 = por %p89, %p90
      %p92 = scmp.ne.s32.totalorder %s84, %s86
      %p93 = scmp.eq.s32.totalorder %s20, 1
      %p94 = por %p92, %p93
      %p95 = scmp.ne.s32.totalorder %s86, %s87
      %p96 = scmp.eq.s32.totalorder %s20, 0
      %p97 = por %p95, %p96
      %p98 = scmp.ne.s32.totalorder %s86, %s87
      %p99 = scmp.eq.s32.totalorder %s21, 1
      %p100 = por %p98, %p99
      %p102 = scmp.ne.s32.totalorder %s87, %s101
      %p103 = scmp.eq.s32.totalorder %s21, 0
      %p104 = por %p102, %p103
      %s105 = ssub.s32 %s22, %s34
      %s106 = ssub.s32 %s23, %s30
      %s107 = sor.u32 %s105, %s106
      %p108 = scmp.eq.s32.totalorder %s107, 0
      %s110 = sadd.s32 %s109, 1
      %s111 = scalar_select %p108, %s109, %s110
      %p114 = pneg %p108
      %p115 = scmp.eq.s32.totalorder %s15, 1
      %p116 = por %p114, %p115
      %p117 = scmp.ne.s32.totalorder %s109, %s112
      %p118 = scmp.eq.s32.totalorder %s15, 0
      %p119 = por %p117, %p118
      %p120 = scmp.ne.s32.totalorder %s109, %s112
      %p121 = scmp.eq.s32.totalorder %s20, 1
      %p122 = por %p120, %p121
      %p123 = scmp.ne.s32.totalorder %s112, %s113
      %p124 = scmp.eq.s32.totalorder %s20, 0
      %p125 = por %p123, %p124
      %p126 = scmp.ne.s32.totalorder %s112, %s113
      %p127 = scmp.eq.s32.totalorder %s21, 1
      %p128 = por %p126, %p127
      %p130 = scmp.ne.s32.totalorder %s113, %s129
      %p131 = scmp.eq.s32.totalorder %s21, 0
      %p132 = por %p130, %p131
      %p133 = scmp.le.s32.totalorder 1, %s15
      %p134 = scmp.lt.s32.totalorder %s15, 3
      %p135 = pnand %p133, %p134
      %p136 = pneg %p135
      // Predicated region
      $region9: #{tpu_custom_call.1} parent=5 // pred_check
        _
      $region10: #{tpu_custom_call.1} parent=5 // pred_check_branch
        %138 = sbr.rel (%p135) target = $region12
      $region11: #{tpu_custom_call.1} parent=5 // pred_region
        %s139 = ssub.s32 %s15, 1
        // Predicated region
        $region13: #{tpu_custom_call.1} parent=11 // pred_check
          %p140 = pneg %p76
        $region14: #{tpu_custom_call.1} parent=11 // pred_check_branch
          %142 = sbr.rel (%p140) target = $region16
        $region15: #{tpu_custom_call.1} parent=11 // pred_region
          _
        $region16: #{tpu_custom_call.1} parent=11 // pred_fallthru
          _
        // Predicated region
        $region17: #{tpu_custom_call.1} parent=11 // pred_check
          %p143 = pneg %p97
        $region18: #{tpu_custom_call.1} parent=11 // pred_check_branch
          %145 = sbr.rel (%p143) target = $region20
        $region19: #{tpu_custom_call.1} parent=11 // pred_region
          _
        $region20: #{tpu_custom_call.1} parent=11 // pred_fallthru
          _
      $region12: #{tpu_custom_call.1} parent=5 // pred_fallthru
        _
      %p146 = scmp.lt.s32.totalorder %s15, 2
      // Predicated region
      $region21: #{tpu_custom_call.1} parent=5 // pred_check
        %p147 = pneg %p146
      $region22: #{tpu_custom_call.1} parent=5 // pred_check_branch
        %149 = sbr.rel (%p147) target = $region24
      $region23: #{tpu_custom_call.1} parent=5 // pred_region
        // Predicated region
        $region25: #{tpu_custom_call.1} parent=23 // pred_check
          %p150 = pneg %p49
        $region26: #{tpu_custom_call.1} parent=23 // pred_check_branch
          %152 = sbr.rel (%p150) target = $region28
        $region27: #{tpu_custom_call.1} parent=23 // pred_region
          %s153 = sand.u32 %s39, 1
          %s154 = scalar_lea.sflag [#allocation3], %s153
          %s155 = sand.u32 %s39, 1
          %s156 = smul.addr %s155, 8
          %s157 = scalar_lea.vmem [#allocation2], %s156
          %s159 = ssub.s32 128, 128
          %160 = vsyncadd %s154, %s159
          %s161 = smul.addr %s22, 2
          %s162 = smul.addr %s23, 4
          %s163 = sadd.s32 %s161, %s162
          %s164 = smul.addr %s163, 64
          %s165 = scalar_lea.hbm %s0, %s164
          %s167 = sshll.u32 %s157, 4
          %s168 = int_to_ptr.vmem [resolvable:$true] %s167
          %170 = dma.hbm_to_vmem [thread:$0]  %s165, 128, %s168, %s154
        $region28: #{tpu_custom_call.1} parent=23 // pred_fallthru
          _
      $region24: #{tpu_custom_call.1} parent=5 // pred_fallthru
        _
      %p171 = scmp.le.s32.totalorder 1, %s15
      %p172 = scmp.lt.s32.totalorder %s15, 3
      %p173 = pnand %p171, %p172
      %p174 = pneg %p173
      // Predicated region
      $region29: #{tpu_custom_call.1} parent=5 // pred_check
        _
      $region30: #{tpu_custom_call.1} parent=5 // pred_check_branch
        %176 = sbr.rel (%p173) target = $region32
      $region31: #{tpu_custom_call.1} parent=5 // pred_region
        %s177 = ssub.s32 %s15, 1
        %s178 = sand.u32 %s42, 1
        %s179 = scalar_lea.sflag [#allocation3], %s178
        %s180 = sand.u32 %s42, 1
        %s181 = smul.addr %s180, 8
        %s182 = scalar_lea.vmem [#allocation2], %s181
        // Predicated region
        $region33: #{tpu_custom_call.1} parent=31 // pred_check
          %p183 = pneg %p55
        $region34: #{tpu_custom_call.1} parent=31 // pred_check_branch
          %185 = sbr.rel (%p183) target = $region36
        $region35: #{tpu_custom_call.1} parent=31 // pred_region
          %186 = dma.done %s179, 128
        $region36: #{tpu_custom_call.1} parent=31 // pred_fallthru
          _
        %s187 = sand.u32 %s42, 1
        %s188 = scalar_lea.sflag [#allocation3], %s187
        %s189 = sand.u32 %s42, 1
        %s190 = smul.addr %s189, 8
        %s191 = scalar_lea.vmem [#allocation2], %s190
        %p192 = pneg %p55
        %p193 = pneg %p52
        %p194 = pneg %p76
        %p195 = pneg %p73
        %p196 = pneg %p97
        %p197 = pneg %p94
        %p198 = pneg %p125
        %p199 = pneg %p122
        %s200 = sand.u32 %s112, 1
        %s201 = scalar_lea.sflag [#allocation4], %s200
        %s202 = sand.u32 %s112, 1
        %s203 = smul.addr %s202, 8
        %s204 = scalar_lea.vmem [#allocation5], %s203
        %v205 = vld [vmem:[%s182] sm:$0xff]
        %v206 = vmax.f32 %v205, 0.0
        %v208 = vcombine.low %v206, %v206
        %209 = vrot.lane.b32.xlu0 %v208, 127
        %v210 = vpop.permute.xlu0 %209
        %211 = vrot.lane.b32.xlu0 %v206, 127
        %v212 = vpop.permute.xlu0 %211
        %vm213 = vcmask 1039360
        %v214 = vsel %vm213, %v210, %v212
        %v216 = vcombine.high %v206, %v206
        %217 = vrot.lane.b32.xlu0 %v206, 126
        %v218 = vpop.permute.xlu0 %217
        %219 = vrot.lane.b32.xlu0 %v216, 126
        %v220 = vpop.permute.xlu0 %219
        %vm221 = vcmask 1031168
        %v222 = vsel %vm221, %v218, %v220
        %vm223 = vcmask 1043456
        %v224 = vsel %vm223, %v206, %v214
        %v225 = vld [vmem:[%s1] sm:$0xff]
        %v226 = vld [vmem:[%s2] sm:$0xff]
        %228 = vset.pattern.permute.xlu0 0
        %229 = vperm.xlu0 %228, %v226
        %v230 = vpop.permute.xlu0 %229
        %vm232 = vcmask 97280
        %v234 = vsel %vm232, %v225, 0
        %v236 = vsel %vm223, %v222, 0
        %238 = vmatprep.subr.mxu0 0.0
        %239 = vmatpush1.msra.mxu0 %v224
        %240 = vmatprep.subr.mxu0 0.0
        %241 = vmatpush1.msra.mxu0 %v236
        %242 = vmatprep.subr.mxu0 0.0
        %243 = vmatpush1.msra.mxu0 0.0
        %244 = vmatprep.subr.mxu0 0.0
        %245 = vmatpush1.msra.mxu0 0.0
        %246 = vmatprep.subr.mxu0 0.0
        %247 = vmatpush1.msra.mxu0 0.0
        %248 = vmatprep.subr.mxu0 0.0
        %249 = vmatpush1.msra.mxu0 0.0
        %250 = vmatprep.subr.mxu0 0.0
        %251 = vmatpush1.msra.mxu0 0.0
        %252 = vmatprep.subr.mxu0 0.0
        %253 = vmatpush1.msra.mxu0 0.0
        %254 = vmatprep.subr.mxu0 0.0
        %255 = vmatpush1.msra.mxu0 0.0
        %256 = vmatprep.subr.mxu0 0.0
        %257 = vmatpush1.msra.mxu0 0.0
        %258 = vmatprep.subr.mxu0 0.0
        %259 = vmatpush1.msra.mxu0 0.0
        %260 = vmatprep.subr.mxu0 0.0
        %261 = vmatpush1.msra.mxu0 0.0
        %262 = vmatprep.subr.mxu0 0.0
        %263 = vmatpush1.msra.mxu0 0.0
        %264 = vmatprep.subr.mxu0 0.0
        %265 = vmatpush1.msra.mxu0 0.0
        %266 = vmatprep.subr.mxu0 0.0
        %267 = vmatpush1.msra.mxu0 0.0
        %268 = vmatprep.subr.mxu0 0.0
        %269 = vmatpush1.msra.mxu0 0.0
        %270 = vmatprep.subr.mxu0 0.0
        %271 = vmatpush1.msra.mxu0 0.0
        %272 = vmatprep.subr.mxu0 0.0
        %273 = vmatpush1.msra.mxu0 0.0
        %274 = vmatprep.subr.mxu0 0.0
        %275 = vmatpush1.msra.mxu0 0.0
        %276 = vmatprep.subr.mxu0 0.0
        %277 = vmatpush1.msra.mxu0 0.0
        %278 = vmatprep.subr.mxu0 0.0
        %279 = vmatpush1.msra.mxu0 0.0
        %280 = vmatprep.subr.mxu0 0.0
        %281 = vmatpush1.msra.mxu0 0.0
        %282 = vmatprep.subr.mxu0 0.0
        %283 = vmatpush1.msra.mxu0 0.0
        %284 = vmatprep.subr.mxu0 0.0
        %285 = vmatpush1.msra.mxu0 0.0
        %286 = vmatprep.subr.mxu0 0.0
        %287 = vmatpush1.msra.mxu0 0.0
        %288 = vmatprep.subr.mxu0 0.0
        %289 = vmatpush1.msra.mxu0 0.0
        %290 = vmatprep.subr.mxu0 0.0
        %291 = vmatpush1.msra.mxu0 0.0
        %292 = vmatprep.subr.mxu0 0.0
        %293 = vmatpush1.msra.mxu0 0.0
        %294 = vmatprep.subr.mxu0 0.0
        %295 = vmatpush1.msra.mxu0 0.0
        %296 = vmatprep.subr.mxu0 0.0
        %297 = vmatpush1.msra.mxu0 0.0
        %298 = vmatprep.subr.mxu0 0.0
        %299 = vmatpush1.msra.mxu0 0.0
        %300 = vmatprep.subr.mxu0 0.0
        %301 = vmatpush1.msra.mxu0 0.0
        %302 = vmatprep.mubr.f32.mxu0 0.0
        %303 = vmatmul.mubr.f32.gmra.mrb[0].mxu0 %v234
        %v304 = vpop.f32.mrb[0].mxu0
        %v305 = vadd.f32 %v230, %v304
        %v306 = vpop.f32.mrb[0].mxu0
        %307 = vdwg.mxu0
        %308 = vst [vmem:[%s204] sm:$0xff] %v305
        %s309 = sand.u32 %s112, 1
        %s310 = scalar_lea.sflag [#allocation4], %s309
        %s311 = sand.u32 %s112, 1
        %s312 = smul.addr %s311, 8
        %s313 = scalar_lea.vmem [#allocation5], %s312
        // Predicated region
        $region37: #{tpu_custom_call.1} parent=31 // pred_check
          %p314 = pneg %p122
        $region38: #{tpu_custom_call.1} parent=31 // pred_check_branch
          %316 = sbr.rel (%p314) target = $region40
        $region39: #{tpu_custom_call.1} parent=31 // pred_region
          %s318 = ssub.s32 128, 128
          %319 = vsyncadd %s310, %s318
          %s320 = sadd.s32 %s25, %s24
          %s321 = smul.addr %s320, 128
          %s322 = scalar_lea.hbm %s3, %s321
          %s324 = sshll.u32 %s313, 4
          %s325 = int_to_ptr.vmem [resolvable:$true] %s324
          %327 = dma.vmem_to_hbm [thread:$0]  %s325, 128, %s322, %s310
        $region40: #{tpu_custom_call.1} parent=31 // pred_fallthru
          _
      $region32: #{tpu_custom_call.1} parent=5 // pred_fallthru
        _
      %p328 = scmp.le.s32.totalorder 2, %s15
      // Predicated region
      $region41: #{tpu_custom_call.1} parent=5 // pred_check
        %p329 = pneg %p328
      $region42: #{tpu_custom_call.1} parent=5 // pred_check_branch
        %331 = sbr.rel (%p329) target = $region44
      $region43: #{tpu_custom_call.1} parent=5 // pred_region
        %s332 = ssub.s32 %s15, 2
        // Predicated region
        $region45: #{tpu_custom_call.1} parent=43 // pred_check
          %p333 = pneg %p128
        $region46: #{tpu_custom_call.1} parent=43 // pred_check_branch
          %335 = sbr.rel (%p333) target = $region48
        $region47: #{tpu_custom_call.1} parent=43 // pred_region
          %s336 = sand.u32 %s113, 1
          %s337 = scalar_lea.sflag [#allocation4], %s336
          %s338 = sand.u32 %s113, 1
          %s339 = smul.addr %s338, 8
          %s340 = scalar_lea.vmem [#allocation5], %s339
          %341 = dma.done %s337, 128
        $region48: #{tpu_custom_call.1} parent=43 // pred_fallthru
          _
      $region44: #{tpu_custom_call.1} parent=5 // pred_fallthru
        _
    $region6: #{tpu_custom_call.1} parent=1 // loop_footer
      %s19 = sadd.s32 1, %s15
    $region7: #{tpu_custom_call.1} parent=1 // loop_footer_branch
      %14 = sbr.rel target = $region3
    $region8: #{tpu_custom_call.1} parent=1 // loop_exit
      _
    %342 = vsyncpa [#allocation3], 1
    %s343 = scalar_lea.sflag [#allocation3], 1
    %344 = vsyncpa %s343, 1
    %345 = vsyncpa [#allocation4], 1
    %s346 = scalar_lea.sflag [#allocation4], 1
    %347 = vsyncpa %s346, 1

</llo_original>
